<compile_context>
chip_gen: v7x
topology: tpu7x:2x2x1
jax: 0.10.0
libtpu: 0.0.40
codegen_flags: <defaults>
</compile_context>

<pallas_src>
import functools

import numpy as np
import jax
import jax.numpy as jnp
from jax.experimental import pallas as pl
from jax.experimental.pallas import tpu as pltpu


def _round_up(a, b):
    return (a + b - 1) // b * b


# Target tile sizes (clamped to the padded problem dims).
_TM, _TN, _TK = 256, 512, 512


# ----------------------------------------------------------------------------
# Pallas kernel: banded tiled matmul with f32 accumulator
# ----------------------------------------------------------------------------
def _interp_kernel(kb_ref, x_ref, w_ref, o_ref, acc_ref):
    k = pl.program_id(2)

    @pl.when(k == 0)
    def _():
        acc_ref[...] = jnp.zeros_like(acc_ref)

    acc_ref[...] += jnp.dot(
        x_ref[...], w_ref[...], preferred_element_type=jnp.float32
    )

    @pl.when(k == pl.num_programs(2) - 1)
    def _():
        o_ref[...] = acc_ref[...].astype(o_ref.dtype)


# ----------------------------------------------------------------------------
# Host-side plan: interpolation matrix + per-output-tile K-window (cached)
# ----------------------------------------------------------------------------
@functools.lru_cache(maxsize=32)
def _build_interp_plan(l_in, l_out, mode, dtype_name):
    compute_dtype = jnp.dtype(dtype_name)

    j = np.arange(l_out, dtype=np.int64)
    if mode == "nearest":
        i0 = (j * l_in) // l_out            # exact integer index math
        i1 = i0.copy()
        w0 = np.ones(l_out, dtype=np.float64)
        w1 = np.zeros(l_out, dtype=np.float64)
    elif mode == "linear":
        # PyTorch default align_corners=False (half-pixel centers), float64 host math.
        src = (j.astype(np.float64) + 0.5) * (l_in / l_out) - 0.5
        src = np.clip(src, 0.0, float(l_in - 1))
        i0 = np.floor(src).astype(np.int64)
        i1 = np.minimum(i0 + 1, l_in - 1)
        w1 = src - i0
        w0 = 1.0 - w1
    else:
        # TODO(synk): bilinear/bicubic (4-D/5-D) interpolate modes not wired up.
        raise ValueError(f"unsupported mode: {mode}")

    # Tile sizes: lane-dense output tiles, (8,128)-aligned blocks.
    tn = min(_TN, _round_up(l_out, 128))
    tk = min(_TK, _round_up(l_in, 128))
    lo_pad = _round_up(l_out, tn)
    li_pad = _round_up(l_in, tk)
    n_tiles = lo_pad // tn
    k_blocks = li_pad // tk

    # Dense padded interpolation matrix; padded rows/cols stay zero.
    w_mat = np.zeros((li_pad, lo_pad), dtype=np.float64)
    np.add.at(w_mat, (i0, j), w0)
    np.add.at(w_mat, (i1, j), w1)

    # Per-output-tile K window (in K-block units) -> banded reduction.
    kb = np.zeros((n_tiles,), dtype=np.int32)
    kpt = 1
    for t in range(n_tiles):
        c0 = t * tn
        c1 = min(c0 + tn, l_out)
        if c0 < l_out:
            lo_blk = int(i0[c0:c1].min()) // tk
            hi_blk = int(i1[c0:c1].max()) // tk
        else:
            lo_blk, hi_blk = 0, 0
        kpt = max(kpt, hi_blk - lo_blk + 1)
        kb[t] = lo_blk
    # Clamp so every window of kpt blocks stays in-range (extra blocks read
    # only zeros of W within this column tile -> correct).
    kb = np.minimum(kb, k_blocks - kpt).astype(np.int32)

    w_dev = jnp.asarray(w_mat.astype(np.float32)).astype(compute_dtype)
    kb_dev = jnp.asarray(kb)
    return w_dev, kb_dev, tn, tk, kpt, li_pad, lo_pad


# ----------------------------------------------------------------------------
# pallas_call wrapper
# ----------------------------------------------------------------------------
def _pallas_banded_interp(x2d, w_dev, kb_dev, tn, tk, kpt, li_pad, lo_pad):
    r, l_in = x2d.shape
    tm = min(_TM, _round_up(max(r, 1), 8))
    r_pad = _round_up(r, tm)

    x_pad = x2d
    if (r_pad != r) or (li_pad != l_in):
        x_pad = jnp.pad(x2d, ((0, r_pad - r), (0, li_pad - l_in)))

    grid = (r_pad // tm, lo_pad // tn, kpt)

    out = pl.pallas_call(
        _interp_kernel,
        out_shape=jax.ShapeDtypeStruct((r_pad, lo_pad), x2d.dtype),
        grid_spec=pltpu.PrefetchScalarGridSpec(
            num_scalar_prefetch=1,
            grid=grid,
            in_specs=[
                # x: only the K-blocks inside this output tile's band.
                pl.BlockSpec((tm, tk), lambda i, j, k, kb: (i, kb[j] + k)),
                # W: matching banded K-block of the interpolation matrix.
                pl.BlockSpec((tk, tn), lambda i, j, k, kb: (kb[j] + k, j)),
            ],
            out_specs=pl.BlockSpec((tm, tn), lambda i, j, k, kb: (i, j)),
            scratch_shapes=[pltpu.VMEM((tm, tn), jnp.float32)],
        ),
        compiler_params=pltpu.CompilerParams(
            dimension_semantics=("parallel", "parallel", "arbitrary"),
            vmem_limit_bytes=32 * 1024 * 1024,
        ),
    )(kb_dev, x_pad, w_dev)
    return out[:r]


# ----------------------------------------------------------------------------
# Module wrapper (PyTorch Interpolate equivalent, 1-D NCL input)
# ----------------------------------------------------------------------------
class Interpolate:
    def __init__(self, size, mode):
        if isinstance(size, (tuple, list)):
            assert len(size) == 1, "only 1-D spatial interpolation supported"
            size = size[0]
        self.size = int(size)
        self.mode = mode

    def __call__(self, x):
        # x: (N, C, L_in) -> (N, C, size)
        n, c, l_in = x.shape
        compute_dtype = jnp.bfloat16 if x.dtype == jnp.bfloat16 else jnp.float32
        w_dev, kb_dev, tn, tk, kpt, li_pad, lo_pad = _build_interp_plan(
            l_in, self.size, self.mode, jnp.dtype(compute_dtype).name
        )
        x2d = x.reshape(n * c, l_in).astype(compute_dtype)
        y2d = _pallas_banded_interp(x2d, w_dev, kb_dev, tn, tk, kpt, li_pad, lo_pad)
        return y2d[:, : self.size].reshape(n, c, self.size).astype(x.dtype)


# ----------------------------------------------------------------------------
# Independent pure-JAX reference (direct gather + lerp, no shared W)
# ----------------------------------------------------------------------------
def _reference(x, size, mode):
    _, _, l_in = x.shape
    j = jnp.arange(size)
    if mode == "nearest":
        idx = (j * l_in) // size
        return x[..., idx].astype(jnp.float32)
    src = (j.astype(jnp.float32) + 0.5) * (l_in / size) - 0.5
    src = jnp.clip(src, 0.0, float(l_in - 1))
    i0 = jnp.floor(src).astype(jnp.int32)
    i1 = jnp.minimum(i0 + 1, l_in - 1)
    w1 = src - i0.astype(jnp.float32)
    xf = x.astype(jnp.float32)
    return xf[..., i0] * (1.0 - w1) + xf[..., i1] * w1


if __name__ == "__main__":
    key = jax.random.PRNGKey(0)
    # Small shapes consistent with a WaveNet conditioning-upsample use:
    # batch=2, channels=4, seq=16, upsampled to 32.
    N, C, L_IN, L_OUT = 2, 4, 16, 32
    x = jax.random.normal(key, (N, C, L_IN), dtype=jnp.float32)

    for mode in ("linear", "nearest"):
        mod = Interpolate(size=L_OUT, mode=mode)
        y = jax.block_until_ready(mod(x))
        y_ref = _reference(x, L_OUT, mode)
        assert y.shape == (N, C, L_OUT)
        assert jnp.max(jnp.abs(y.astype(jnp.float32) - y_ref)) < 1e-5, mode

    print("KERNEL_OK")
</pallas_src>

<mosaic_0001>
module attributes {stable_mosaic.version = 11 : i64} {
  func.func @_interp_kernel(%arg0: i32, %arg1: i32, %arg2: i32, %arg3: memref<1xi32, #tpu.memory_space<smem>>, %arg4: memref<8x128xf32, #tpu.memory_space<vmem>>, %arg5: memref<128x128xf32, #tpu.memory_space<vmem>>, %arg6: memref<8x128xf32, #tpu.memory_space<vmem>>, %arg7: memref<8x128xf32, #tpu.memory_space<vmem>>) attributes {dimension_semantics = [#tpu.dimension_semantics<parallel>, #tpu.dimension_semantics<parallel>, #tpu.dimension_semantics<arbitrary>], iteration_bounds = array<i64: 1, 1, 1>, scalar_prefetch = 1 : i64, scratch_operands = 1 : i64, tpu.core_type = #tpu.core_type<tc>, window_params = [{transform_indices = @transform_0, window_bounds = array<i64: 8, 128>}, {transform_indices = @transform_1, window_bounds = array<i64: 128, 128>}, {transform_indices = @transform_2, window_bounds = array<i64: 8, 128>}]} {
    %c0_i32 = arith.constant 0 : i32
    %0 = arith.cmpi eq, %arg2, %c0_i32 : i32
    %1 = arith.extui %0 : i1 to i32
    %c0_i32_0 = arith.constant 0 : i32
    %2 = arith.cmpi ne, %1, %c0_i32_0 : i32
    scf.if %2 {
      %cst_10 = arith.constant 0.000000e+00 : f32
      %12 = vector.broadcast %cst_10 : f32 to vector<8x128xf32>
      %c0_11 = arith.constant 0 : index
      %c0_12 = arith.constant 0 : index
      %13 = vector.load %arg7[%c0_11, %c0_12] : memref<8x128xf32, #tpu.memory_space<vmem>>, vector<8x128xf32>
      tpu.vector_store %arg7[%c0_11, %c0_12], %12 {strides = array<i32>} : memref<8x128xf32, #tpu.memory_space<vmem>>, vector<8x128xf32>,
    } else {
    }
    %c0 = arith.constant 0 : index
    %c0_1 = arith.constant 0 : index
    %3 = vector.load %arg7[%c0, %c0_1] : memref<8x128xf32, #tpu.memory_space<vmem>>, vector<8x128xf32>
    %c0_2 = arith.constant 0 : index
    %c0_3 = arith.constant 0 : index
    %4 = vector.load %arg4[%c0_2, %c0_3] : memref<8x128xf32, #tpu.memory_space<vmem>>, vector<8x128xf32>
    %c0_4 = arith.constant 0 : index
    %c0_5 = arith.constant 0 : index
    %5 = vector.load %arg5[%c0_4, %c0_5] : memref<128x128xf32, #tpu.memory_space<vmem>>, vector<128x128xf32>
    %cst = arith.constant dense<0.000000e+00> : vector<8x128xf32>
    %6 = tpu.matmul %4, %5, %cst {dimension_numbers = #tpu.dot_dimension_numbers<[1], [0], [0], [1], [0, 0, 1, 1], [], []>} : vector<8x128xf32>, vector<128x128xf32>, vector<8x128xf32> -> vector<8x128xf32>
    %7 = arith.addf %3, %6 : vector<8x128xf32>
    %c0_6 = arith.constant 0 : index
    %c0_7 = arith.constant 0 : index
    %8 = vector.load %arg7[%c0_6, %c0_7] : memref<8x128xf32, #tpu.memory_space<vmem>>, vector<8x128xf32>
    tpu.vector_store %arg7[%c0_6, %c0_7], %7 {strides = array<i32>} : memref<8x128xf32, #tpu.memory_space<vmem>>, vector<8x128xf32>,
    %c0_i32_8 = arith.constant 0 : i32
    %9 = arith.cmpi eq, %arg2, %c0_i32_8 : i32
    %10 = arith.extui %9 : i1 to i32
    %c0_i32_9 = arith.constant 0 : i32
    %11 = arith.cmpi ne, %10, %c0_i32_9 : i32
    scf.if %11 {
      %c0_10 = arith.constant 0 : index
      %c0_11 = arith.constant 0 : index
      %12 = vector.load %arg7[%c0_10, %c0_11] : memref<8x128xf32, #tpu.memory_space<vmem>>, vector<8x128xf32>
      %c0_12 = arith.constant 0 : index
      %c0_13 = arith.constant 0 : index
      %13 = vector.load %arg6[%c0_12, %c0_13] : memref<8x128xf32, #tpu.memory_space<vmem>>, vector<8x128xf32>
      tpu.vector_store %arg6[%c0_12, %c0_13], %12 {strides = array<i32>} : memref<8x128xf32, #tpu.memory_space<vmem>>, vector<8x128xf32>,
    } else {
    }
    return
  }
  func.func @transform_0(%arg0: i32, %arg1: i32, %arg2: i32, %arg3: memref<1xi32, #tpu.memory_space<smem>>) -> (i32, i32) {
    %0 = arith.index_cast %arg1 : i32 to index
    %1 = memref.load %arg3[%0] : memref<1xi32, #tpu.memory_space<smem>>
    %2 = arith.addi %1, %arg2 : i32
    %c0_i32 = arith.constant 0 : i32
    return %arg0, %2 : i32, i32
  }
  func.func @transform_1(%arg0: i32, %arg1: i32, %arg2: i32, %arg3: memref<1xi32, #tpu.memory_space<smem>>) -> (i32, i32) {
    %0 = arith.index_cast %arg1 : i32 to index
    %1 = memref.load %arg3[%0] : memref<1xi32, #tpu.memory_space<smem>>
    %2 = arith.addi %1, %arg2 : i32
    %c0_i32 = arith.constant 0 : i32
    return %2, %arg1 : i32, i32
  }
  func.func @transform_2(%arg0: i32, %arg1: i32, %arg2: i32, %arg3: memref<1xi32, #tpu.memory_space<smem>>) -> (i32, i32) {
    %c0_i32 = arith.constant 0 : i32
    return %arg0, %arg1 : i32, i32
  }
}

</mosaic_0001>

<llo_original>
// kernel: tpu_custom_call.1
$region0: #{tpu_custom_call.1}
  #allocation0 [shape = 'u32[]', space=smem, size = 0x4, offset = 0x4, fixed_abs, tag = 'smem constant byte address 0x4 - core index']
  #allocation1 [shape = 'u32[144,128]{1,0:T(1,128)}', space=vmem, size = 0x12000, scoped, tag = 'internal scratch']
  #allocation2 [shape = 'f32[8,128]{1,0:T(8,128)}', space=vmem, size = 0x1000, scoped, tag = 'scratch operand']
  #allocation3 [shape = 's32[1]{0}', space=sflag, size = 0x4, scoped, tag = 'scoped memory for tpu_custom_call.1']
  #allocation4 [shape = 's32[1]{0:T(128)S(6)}', space=smem, size = 0x200, scoped, tag = 'prefetched SMEM operand 0']
  %s0 = inlined_call_operand.<no memory space> [shape: s32[1], index: 0, kind: input, shape index: {}]
  %s1 = inlined_call_operand.hbm [shape: f32[8,128], index: 1, kind: input, shape index: {}]
  %s2 = inlined_call_operand.hbm [shape: f32[128,128], index: 2, kind: input, shape index: {}]
  %s3 = inlined_call_operand.hbm [shape: f32[8,128], index: 3, kind: output, shape index: {}]
  %s4 = sld [smem:[#allocation0]]
  $region34: #{tpu_custom_call.1} parent=0
    _
  %s6 = ssub.s32 1, %s4
  %s7 = scalar_select 0, %s6, %s4
  %8 = sst [smem:[#allocation4]] %s0
  $region1: #{tpu_custom_call.1} parent=0
    #allocation5 [shape = 'u8[4096]{0}', space=vmem, size = 0x1000, scoped, tag = 'input window, operand 1, single buffered']
    #allocation6 [shape = 's32[1]{0}', space=sflag, size = 0x4, scoped, tag = 'scoped memory for tpu_custom_call.1']
    #allocation7 [shape = 's32[1]{0}', space=sflag, size = 0x4, scoped, tag = 'scoped memory for tpu_custom_call.1']
    #allocation8 [shape = 'u8[65536]{0}', space=vmem, size = 0x10000, scoped, tag = 'input window, operand 2, single buffered']
    #allocation9 [shape = 's32[1]{0}', space=sflag, size = 0x4, scoped, tag = 'scoped memory for tpu_custom_call.1']
    #allocation10 [shape = 'u8[4096]{0}', space=vmem, size = 0x1000, scoped, tag = 'output window, operand 0, single buffered']
    %9 = vsyncpa [#allocation6], 0
    %10 = vsyncpa [#allocation9], 0
    %11 = vsyncpa [#allocation7], 0
    // Predicated region
    $region2: #{tpu_custom_call.1} parent=1 // pred_check
      _
    $region3: #{tpu_custom_call.1} parent=1 // pred_check_branch
      %13 = sbr.rel (0) target = $region5
    $region4: #{tpu_custom_call.1} parent=1 // pred_region
      %s14 = sld [smem:[#allocation4]]
      %s15 = sadd.s32 %s14, 0
      %s17 = ssub.s32 128, 128
      %18 = vsyncadd [#allocation6], %s17
      %s19 = smul.addr %s15, 128
      %s20 = scalar_lea.hbm %s1, %s19
      %s22 = sshll.u32 [#allocation5], 4
      %s23 = int_to_ptr.vmem [resolvable:$true] %s22
      %25 = dma.hbm_to_vmem [thread:$0]  %s20, 128, %s23, [#allocation6]
    $region5: #{tpu_custom_call.1} parent=1 // pred_fallthru
      _
    // Predicated region
    $region6: #{tpu_custom_call.1} parent=1 // pred_check
      _
    $region7: #{tpu_custom_call.1} parent=1 // pred_check_branch
      %27 = sbr.rel (0) target = $region9
    $region8: #{tpu_custom_call.1} parent=1 // pred_region
      %s28 = sld [smem:[#allocation4]]
      %s29 = sadd.s32 %s28, 0
      %s30 = smul.u32 16, %s29
      %s32 = ssub.s32 2048, 2048
      %33 = vsyncadd [#allocation9], %s32
      %s34 = smul.addr %s30, 128
      %s35 = scalar_lea.hbm %s2, %s34
      %s36 = sshll.u32 [#allocation8], 4
      %s37 = int_to_ptr.vmem [resolvable:$true] %s36
      %42 = dma.hbm_to_vmem [thread:$0]  %s35, 2048, %s37, [#allocation9], 128, 128, 8
    $region9: #{tpu_custom_call.1} parent=1 // pred_fallthru
      _
    // Predicated region
    $region10: #{tpu_custom_call.1} parent=1 // pred_check
      _
    $region11: #{tpu_custom_call.1} parent=1 // pred_check_branch
      %44 = sbr.rel (0) target = $region13
    $region12: #{tpu_custom_call.1} parent=1 // pred_region
      %45 = dma.done [#allocation6], 128
    $region13: #{tpu_custom_call.1} parent=1 // pred_fallthru
      _
    // Predicated region
    $region14: #{tpu_custom_call.1} parent=1 // pred_check
      _
    $region15: #{tpu_custom_call.1} parent=1 // pred_check_branch
      %47 = sbr.rel (0) target = $region17
    $region16: #{tpu_custom_call.1} parent=1 // pred_region
      %48 = dma.done [#allocation9], 2048
    $region17: #{tpu_custom_call.1} parent=1 // pred_fallthru
      _
    %s49 = sld [smem:[#allocation4]]
    %s50 = sadd.s32 %s49, 0
    %s51 = sld [smem:[#allocation4]]
    %s52 = sadd.s32 %s51, 0
    %s53 = smul.u32 16, %s52
    %p54 = scmp.eq.s32.totalorder 0, 0
    // Predicated region
    $region18: #{tpu_custom_call.1} parent=1 // pred_check
      %p55 = pneg %p54
    $region19: #{tpu_custom_call.1} parent=1 // pred_check_branch
      %57 = sbr.rel (%p55) target = $region21
    $region20: #{tpu_custom_call.1} parent=1 // pred_region
      %58 = vst [vmem:[#allocation2] sm:$0xff] 0.0
    $region21: #{tpu_custom_call.1} parent=1 // pred_fallthru
      _
    %v59 = vld [vmem:[#allocation2] sm:$0xff]
    %v60 = vld [vmem:[#allocation5] sm:$0xff]
    %v61 = vld [vmem:[#allocation8] sm:$0xff]
    %v62 = vld [vmem:[#allocation8 + $0x8] sm:$0xff]
    %v63 = vld [vmem:[#allocation8 + $0x10] sm:$0xff]
    %v64 = vld [vmem:[#allocation8 + $0x18] sm:$0xff]
    %v65 = vld [vmem:[#allocation8 + $0x20] sm:$0xff]
    %v66 = vld [vmem:[#allocation8 + $0x28] sm:$0xff]
    %v67 = vld [vmem:[#allocation8 + $0x30] sm:$0xff]
    %v68 = vld [vmem:[#allocation8 + $0x38] sm:$0xff]
    %v69 = vld [vmem:[#allocation8 + $0x40] sm:$0xff]
    %v70 = vld [vmem:[#allocation8 + $0x48] sm:$0xff]
    %v71 = vld [vmem:[#allocation8 + $0x50] sm:$0xff]
    %v72 = vld [vmem:[#allocation8 + $0x58] sm:$0xff]
    %v73 = vld [vmem:[#allocation8 + $0x60] sm:$0xff]
    %v74 = vld [vmem:[#allocation8 + $0x68] sm:$0xff]
    %v75 = vld [vmem:[#allocation8 + $0x70] sm:$0xff]
    %v76 = vld [vmem:[#allocation8 + $0x78] sm:$0xff]
    %77 = vmatprep.subr.mxu0 0.0
    %78 = vmatpush1.msra.mxu0 %v61
    %79 = vmatprep.subr.mxu0 0.0
    %80 = vmatpush1.msra.mxu0 %v62
    %81 = vmatprep.subr.mxu0 0.0
    %82 = vmatpush1.msra.mxu0 %v63
    %83 = vmatprep.subr.mxu0 0.0
    %84 = vmatpush1.msra.mxu0 %v64
    %85 = vmatprep.subr.mxu0 0.0
    %86 = vmatpush1.msra.mxu0 %v65
    %87 = vmatprep.subr.mxu0 0.0
    %88 = vmatpush1.msra.mxu0 %v66
    %89 = vmatprep.subr.mxu0 0.0
    %90 = vmatpush1.msra.mxu0 %v67
    %91 = vmatprep.subr.mxu0 0.0
    %92 = vmatpush1.msra.mxu0 %v68
    %93 = vmatprep.subr.mxu0 0.0
    %94 = vmatpush1.msra.mxu0 %v69
    %95 = vmatprep.subr.mxu0 0.0
    %96 = vmatpush1.msra.mxu0 %v70
    %97 = vmatprep.subr.mxu0 0.0
    %98 = vmatpush1.msra.mxu0 %v71
    %99 = vmatprep.subr.mxu0 0.0
    %100 = vmatpush1.msra.mxu0 %v72
    %101 = vmatprep.subr.mxu0 0.0
    %102 = vmatpush1.msra.mxu0 %v73
    %103 = vmatprep.subr.mxu0 0.0
    %104 = vmatpush1.msra.mxu0 %v74
    %105 = vmatprep.subr.mxu0 0.0
    %106 = vmatpush1.msra.mxu0 %v75
    %107 = vmatprep.subr.mxu0 0.0
    %108 = vmatpush1.msra.mxu0 %v76
    %109 = vmatprep.subr.mxu0 0.0
    %110 = vmatpush1.msra.mxu0 0.0
    %111 = vmatprep.subr.mxu0 0.0
    %112 = vmatpush1.msra.mxu0 0.0
    %113 = vmatprep.subr.mxu0 0.0
    %114 = vmatpush1.msra.mxu0 0.0
    %115 = vmatprep.subr.mxu0 0.0
    %116 = vmatpush1.msra.mxu0 0.0
    %117 = vmatprep.subr.mxu0 0.0
    %118 = vmatpush1.msra.mxu0 0.0
    %119 = vmatprep.subr.mxu0 0.0
    %120 = vmatpush1.msra.mxu0 0.0
    %121 = vmatprep.subr.mxu0 0.0
    %122 = vmatpush1.msra.mxu0 0.0
    %123 = vmatprep.subr.mxu0 0.0
    %124 = vmatpush1.msra.mxu0 0.0
    %125 = vmatprep.subr.mxu0 0.0
    %126 = vmatpush1.msra.mxu0 0.0
    %127 = vmatprep.subr.mxu0 0.0
    %128 = vmatpush1.msra.mxu0 0.0
    %129 = vmatprep.subr.mxu0 0.0
    %130 = vmatpush1.msra.mxu0 0.0
    %131 = vmatprep.subr.mxu0 0.0
    %132 = vmatpush1.msra.mxu0 0.0
    %133 = vmatprep.subr.mxu0 0.0
    %134 = vmatpush1.msra.mxu0 0.0
    %135 = vmatprep.subr.mxu0 0.0
    %136 = vmatpush1.msra.mxu0 0.0
    %137 = vmatprep.subr.mxu0 0.0
    %138 = vmatpush1.msra.mxu0 0.0
    %139 = vmatprep.subr.mxu0 0.0
    %140 = vmatpush1.msra.mxu0 0.0
    %141 = vmatprep.mubr.f32.mxu0 0.0
    %142 = vmatmul.mubr.f32.gmra.mrb[0].mxu0 %v60
    %v143 = vpop.f32.mrb[0].mxu0
    %v144 = vadd.f32 0.0, %v143
    %v145 = vpop.f32.mrb[0].mxu0
    %146 = vdwg.mxu0
    %v147 = vadd.f32 %v59, %v144
    %148 = vst [vmem:[#allocation2] sm:$0xff] %v147
    // Predicated region
    $region22: #{tpu_custom_call.1} parent=1 // pred_check
      %p149 = pneg %p54
    $region23: #{tpu_custom_call.1} parent=1 // pred_check_branch
      %151 = sbr.rel (%p149) target = $region25
    $region24: #{tpu_custom_call.1} parent=1 // pred_region
      %v152 = vld [vmem:[#allocation2] sm:$0xff]
      %153 = vst [vmem:[#allocation10] sm:$0xff] %v152
    $region25: #{tpu_custom_call.1} parent=1 // pred_fallthru
      _
    // Predicated region
    $region26: #{tpu_custom_call.1} parent=1 // pred_check
      _
    $region27: #{tpu_custom_call.1} parent=1 // pred_check_branch
      %155 = sbr.rel (0) target = $region29
    $region28: #{tpu_custom_call.1} parent=1 // pred_region
      %s157 = ssub.s32 128, 128
      %158 = vsyncadd [#allocation7], %s157
      %s160 = sshll.u32 [#allocation10], 4
      %s161 = int_to_ptr.vmem [resolvable:$true] %s160
      %163 = dma.vmem_to_hbm [thread:$0]  %s161, 128, %s3, [#allocation7]
    $region29: #{tpu_custom_call.1} parent=1 // pred_fallthru
      _
    // Predicated region
    $region30: #{tpu_custom_call.1} parent=1 // pred_check
      _
    $region31: #{tpu_custom_call.1} parent=1 // pred_check_branch
      %165 = sbr.rel (0) target = $region33
    $region32: #{tpu_custom_call.1} parent=1 // pred_region
      %166 = dma.done [#allocation7], 128
    $region33: #{tpu_custom_call.1} parent=1 // pred_fallthru
      _
    %167 = vsyncpa [#allocation6], 1
    %168 = vsyncpa [#allocation9], 1
    %169 = vsyncpa [#allocation7], 1

</llo_original>
